<compile_context>
chip_gen: v5e
topology: v5e:2x2
jax: 0.10.0
libtpu: 0.0.40
codegen_flags: <defaults>
</compile_context>

<pallas_src>
import jax
import jax.numpy as jnp
from jax.experimental import pallas as pl
from jax.experimental.pallas import tpu as pltpu


# -----------------------------------------------------------------------------
# Fused GRU-stack recurrence kernel factory.
#   Each grid step consumes a (TB, B, I) x block and a (TB, B, 1) mask block,
#   runs TB timesteps of the N-layer GRU with all weights resident in VMEM,
#   writes the top-layer hidden of each step to a (TB, B, H) output block, and
#   carries the (N, B, H) hidden state in the hxs output block itself.
# -----------------------------------------------------------------------------
def _make_gru_kernel(num_layers, hidden, t_total, time_block, mxu_dtype, guard):
    H = hidden
    TB = time_block

    def kernel(*refs):
        it = iter(refs)
        x_ref = next(it)                                     # (TB, B, I)  mxu_dtype
        m_ref = next(it)                                     # (TB, B, 1)  f32
        h0_ref = next(it)                                    # (N,  B, H)  f32
        wih_refs = [next(it) for _ in range(num_layers)]     # (K_l, 3H)   mxu_dtype
        whh_refs = [next(it) for _ in range(num_layers)]     # (H,  3H)    mxu_dtype
        bi_refs = [next(it) for _ in range(num_layers)]      # (1,  3H)    f32
        bhn_refs = [next(it) for _ in range(num_layers)]     # (1,   H)    f32
        y_ref = next(it)                                     # (TB, B, H)  f32 out
        hxs_ref = next(it)                                   # (N,  B, H)  f32 out / carry

        g = pl.program_id(0)

        @pl.when(g == 0)
        def _init():
            hxs_ref[...] = h0_ref[...]

        def one_step(k):
            m = m_ref[k]                                     # (B, 1) episode-reset mask
            inp = x_ref[k]                                   # (B, I)
            # TODO(synk): per-step h*mask matches PyTorch's has_zeros segmentation
            # only for binary masks (the standard MAPPO case).
            for l in range(num_layers):
                h_l = hxs_ref[l] * m                         # (B, H) f32
                gi = jnp.dot(inp.astype(mxu_dtype), wih_refs[l][...],
                             preferred_element_type=jnp.float32) + bi_refs[l][...]
                gh = jnp.dot(h_l.astype(mxu_dtype), whh_refs[l][...],
                             preferred_element_type=jnp.float32)
                r = jax.nn.sigmoid(gi[:, :H] + gh[:, :H])
                z = jax.nn.sigmoid(gi[:, H:2 * H] + gh[:, H:2 * H])
                n = jnp.tanh(gi[:, 2 * H:] + r * (gh[:, 2 * H:] + bhn_refs[l][...]))
                h_new = (1.0 - z) * n + z * h_l
                hxs_ref[l] = h_new
                inp = h_new
            y_ref[k] = inp

        def body(k, carry):
            if guard:            # only traced when T % TB != 0 (padded tail block)
                @pl.when(g * TB + k < t_total)
                def _():
                    one_step(k)
            else:
                one_step(k)
            return carry

        jax.lax.fori_loop(0, TB, body, 0, unroll=(TB <= 8))

    return kernel


# -----------------------------------------------------------------------------
# Deterministic parameter init (synthetic, mirrors the module __init__ shapes)
# -----------------------------------------------------------------------------
def _orthogonal(key, shape, gain=1.0):
    rows, cols = shape
    n = max(rows, cols)
    a = jax.random.normal(key, (n, n), jnp.float32)
    q, r = jnp.linalg.qr(a)
    d = jnp.diag(r)
    q = q * jnp.where(d == 0, 1.0, jnp.sign(d))[None, :]
    return gain * q[:rows, :cols]


class RNNLayerMetaPallas:
    """JAX/Pallas port of RNNLayer_Meta's forward pass."""

    def __init__(self, inputs_dim, outputs_dim, recurrent_N, use_orthogonal=True,
                 key=None, mxu_dtype=jnp.bfloat16, time_block=8):
        if key is None:
            key = jax.random.PRNGKey(0)
        self.inputs_dim = inputs_dim
        self.hidden = outputs_dim
        self.recurrent_N = recurrent_N
        self.mxu_dtype = mxu_dtype
        self.time_block = time_block
        H = outputs_dim
        keys = jax.random.split(key, 2 * recurrent_N + 1)

        self.w_ih, self.w_hh, self.b_i, self.b_hn = [], [], [], []
        for l in range(recurrent_N):
            in_dim = inputs_dim if l == 0 else outputs_dim
            if use_orthogonal:
                w_ih = _orthogonal(keys[2 * l], (3 * H, in_dim))
                w_hh = _orthogonal(keys[2 * l + 1], (3 * H, H))
            else:  # xavier uniform
                b1 = (6.0 / (3 * H + in_dim)) ** 0.5
                b2 = (6.0 / (3 * H + H)) ** 0.5
                w_ih = jax.random.uniform(keys[2 * l], (3 * H, in_dim), jnp.float32, -b1, b1)
                w_hh = jax.random.uniform(keys[2 * l + 1], (3 * H, H), jnp.float32, -b2, b2)
            b_ih = jnp.zeros((3 * H,), jnp.float32)   # GRU biases init to 0 in the module
            b_hh = jnp.zeros((3 * H,), jnp.float32)
            # Fused lane-contiguous (K, 3H) slabs, PyTorch gate column order [r | z | n].
            self.w_ih.append(jnp.asarray(w_ih.T, mxu_dtype))
            self.w_hh.append(jnp.asarray(w_hh.T, mxu_dtype))
            # Pre-fold b_hr / b_hz into the input-side bias; only b_hn stays separate.
            b_comb = b_ih + jnp.concatenate(
                [b_hh[:H], b_hh[H:2 * H], jnp.zeros((H,), jnp.float32)])
            self.b_i.append(b_comb.reshape(1, 3 * H))
            self.b_hn.append(b_hh[2 * H:].reshape(1, H))

        # LayerNorm(H) params
        self.ln_gamma = jnp.ones((1, H), jnp.float32)
        self.ln_beta = jnp.zeros((1, H), jnp.float32)
        # wager = Linear(H, 2)
        bound = 1.0 / (H ** 0.5)
        self.wager_w_t = jax.random.uniform(keys[-1], (H, 2), jnp.float32, -bound, bound)
        self.wager_b = jnp.zeros((1, 2), jnp.float32)

    # ---- non-recurrent head, hoisted out of the kernel (one batched XLA op) ----
    def _layer_norm(self, v):  # PyTorch LayerNorm: eps=1e-5, biased variance
        mu = jnp.mean(v, axis=-1, keepdims=True)
        var = jnp.mean((v - mu) ** 2, axis=-1, keepdims=True)
        return (v - mu) * jax.lax.rsqrt(var + 1e-5) * self.ln_gamma + self.ln_beta

    def __call__(self, x, hxs, masks, prev_h1, prev_h2,
                 cascade_rate1, cascade_rate2, wager=False):
        N, H, I = self.recurrent_N, self.hidden, self.inputs_dim
        x = jnp.asarray(x, jnp.float32)
        hxs = jnp.asarray(hxs, jnp.float32)
        masks = jnp.asarray(masks, jnp.float32)
        B = hxs.shape[0]
        rows = x.shape[0]
        T = 1 if rows == B else rows // B            # single-step vs sequence path

        TB = min(self.time_block, T)
        n_blocks = (T + TB - 1) // TB
        T_pad = n_blocks * TB
        guard = T_pad != T

        x_seq = x.reshape(T, B, I).astype(self.mxu_dtype)
        m_seq = masks.reshape(rows, -1)[:, :1].reshape(T, B, 1)
        if guard:
            x_seq = jnp.pad(x_seq, ((0, T_pad - T), (0, 0), (0, 0)))
            m_seq = jnp.pad(m_seq, ((0, T_pad - T), (0, 0), (0, 0)), constant_values=1.0)
        h0 = jnp.transpose(hxs, (1, 0, 2))           # (N, B, H)

        stepx = lambda g: (g, 0, 0)
        const3 = lambda g: (0, 0, 0)
        const2 = lambda g: (0, 0)

        in_specs = [pl.BlockSpec((TB, B, I), stepx),
                    pl.BlockSpec((TB, B, 1), stepx),
                    pl.BlockSpec((N, B, H), const3)]
        inputs = [x_seq, m_seq, h0]
        for l in range(N):
            k_l = I if l == 0 else H
            in_specs.append(pl.BlockSpec((k_l, 3 * H), const2)); inputs.append(self.w_ih[l])
        for l in range(N):
            in_specs.append(pl.BlockSpec((H, 3 * H), const2)); inputs.append(self.w_hh[l])
        for l in range(N):
            in_specs.append(pl.BlockSpec((1, 3 * H), const2)); inputs.append(self.b_i[l])
        for l in range(N):
            in_specs.append(pl.BlockSpec((1, H), const2)); inputs.append(self.b_hn[l])

        out_shape = (jax.ShapeDtypeStruct((T_pad, B, H), jnp.float32),
                     jax.ShapeDtypeStruct((N, B, H), jnp.float32))
        out_specs = (pl.BlockSpec((TB, B, H), stepx),
                     pl.BlockSpec((N, B, H), const3))

        kernel = _make_gru_kernel(N, H, T, TB, self.mxu_dtype, guard)
        y, h_last = pl.pallas_call(
            kernel,
            grid=(n_blocks,),
            in_specs=in_specs,
            out_specs=out_specs,
            out_shape=out_shape,
            compiler_params=pltpu.CompilerParams(
                dimension_semantics=("arbitrary",)),
        )(*inputs)
        # TODO(synk): for very large H/N on v7x (64 MiB VMEM), add
        # pipeline_mode=pl.Buffered(1) on the constant-index weight specs, an
        # explicit vmem_limit_bytes, and a batch-parallel leading grid axis to
        # engage the second TensorCore.

        x_flat = y[:T].reshape(rows, H)              # top-layer hidden for every step
        hxs_out = jnp.transpose(h_last, (1, 0, 2))   # (B, N, H)

        if wager:
            # wager head: LayerNorm -> cascade -> Linear(H, 2) -> sigmoid
            xn = self._layer_norm(x_flat)
            cas = xn
            if prev_h2 is not None:
                cas = cascade_rate2 * xn + (1.0 - cascade_rate2) * jnp.asarray(prev_h2, jnp.float32)
            out = jax.nn.sigmoid(cas @ self.wager_w_t + self.wager_b)
            return out, hxs_out, cas
        else:
            # non-wager head: cascade -> LayerNorm
            cas = x_flat
            if prev_h1 is not None:
                cas = cascade_rate1 * x_flat + (1.0 - cascade_rate1) * jnp.asarray(prev_h1, jnp.float32)
            out = self._layer_norm(cas)
            return out, hxs_out, cas


# -----------------------------------------------------------------------------
# Demo
# -----------------------------------------------------------------------------
if __name__ == "__main__":
    key = jax.random.PRNGKey(0)
    k_param, k1, k2, k3, k4, k5, k6, k7, k8, k9, k10 = jax.random.split(key, 11)
    inputs_dim, hidden, N = 32, 32, 1
    model = RNNLayerMetaPallas(inputs_dim, hidden, N, use_orthogonal=True, key=k_param)

    # Case 1: single-step rollout path, non-wager head with cascade.
    B = 8
    x = jax.random.normal(k1, (B, inputs_dim), jnp.float32)
    hxs = jax.random.normal(k2, (B, N, hidden), jnp.float32)
    masks = jnp.ones((B, 1), jnp.float32).at[3, 0].set(0.0)
    prev_h1 = jax.random.normal(k3, (B, hidden), jnp.float32)
    y1, h1, c1 = model(x, hxs, masks, prev_h1, None, 0.7, 0.5, wager=False)

    # Case 2: single-step path, wager head with cascade.
    prev_h2 = jax.random.normal(k4, (B, hidden), jnp.float32)
    y2, h2, c2 = model(x, hxs, masks, None, prev_h2, 0.7, 0.5, wager=True)

    # Case 3: sequence (training) path with a mask reset mid-episode.
    T, Bs = 4, 2
    xs = jax.random.normal(k5, (T * Bs, inputs_dim), jnp.float32)
    hxs_s = jax.random.normal(k6, (Bs, N, hidden), jnp.float32)
    masks_s = jnp.ones((T * Bs, 1), jnp.float32).at[2 * Bs, 0].set(0.0)
    y3, h3, c3 = model(xs, hxs_s, masks_s, None, None, 0.7, 0.5, wager=False)

    # Case 4: two stacked GRU layers, input dim != hidden dim, single step.
    model2 = RNNLayerMetaPallas(24, hidden, 2, use_orthogonal=False, key=k7)
    x4 = jax.random.normal(k8, (B, 24), jnp.float32)
    hxs4 = jax.random.normal(k9, (B, 2, hidden), jnp.float32)
    y4, h4, c4 = model2(x4, hxs4, jnp.ones((B, 1), jnp.float32),
                        prev_h1, None, 0.3, 0.5, wager=False)

    # Case 5: float32 MXU operands, sequence + wager head.
    model_f32 = RNNLayerMetaPallas(inputs_dim, hidden, N, use_orthogonal=True,
                                   key=k_param, mxu_dtype=jnp.float32)
    y5, h5, c5 = model_f32(xs, hxs_s, masks_s, None, None, 0.7, 0.5, wager=True)

    # Case 6: long sequence (T=10 > time_block=8) exercising the blocked /
    # guarded (padded tail) time loop.
    T6 = 10
    xl = jax.random.normal(k10, (T6 * Bs, inputs_dim), jnp.float32)
    masks_l = jnp.ones((T6 * Bs, 1), jnp.float32).at[5 * Bs, 0].set(0.0)
    y6, h6, c6 = model(xl, hxs_s, masks_l, None, None, 0.7, 0.5, wager=False)

    for t_ in (y1, h1, c1, y2, h2, c2, y3, h3, c3, y4, h4, c4,
               y5, h5, c5, y6, h6, c6):
        jax.block_until_ready(t_)

    assert y1.shape == (B, hidden) and h1.shape == (B, N, hidden) and c1.shape == (B, hidden)
    assert y2.shape == (B, 2) and h2.shape == (B, N, hidden) and c2.shape == (B, hidden)
    assert y3.shape == (T * Bs, hidden) and h3.shape == (Bs, N, hidden)
    assert y4.shape == (B, hidden) and h4.shape == (B, 2, hidden)
    assert y5.shape == (T * Bs, 2) and h5.shape == (Bs, N, hidden)
    assert y6.shape == (T6 * Bs, hidden) and h6.shape == (Bs, N, hidden)
    print("KERNEL_OK")
</pallas_src>

<mosaic_0001>
module attributes {stable_mosaic.version = 11 : i64} {
  func.func @kernel(%arg0: i32, %arg1: memref<1x8x32xbf16, #tpu.memory_space<vmem>>, %arg2: memref<1x8x1xf32, #tpu.memory_space<vmem>>, %arg3: memref<1x8x32xf32, #tpu.memory_space<vmem>>, %arg4: memref<32x96xbf16, #tpu.memory_space<vmem>>, %arg5: memref<32x96xbf16, #tpu.memory_space<vmem>>, %arg6: memref<1x96xf32, #tpu.memory_space<vmem>>, %arg7: memref<1x32xf32, #tpu.memory_space<vmem>>, %arg8: memref<1x8x32xf32, #tpu.memory_space<vmem>>, %arg9: memref<1x8x32xf32, #tpu.memory_space<vmem>>) attributes {dimension_semantics = [#tpu.dimension_semantics<arbitrary>], iteration_bounds = array<i64: 1>, scalar_prefetch = 0 : i64, scratch_operands = 0 : i64, tpu.core_type = #tpu.core_type<tc>, window_params = [{transform_indices = @transform_0, window_bounds = array<i64: 1, 8, 32>}, {transform_indices = @transform_1, window_bounds = array<i64: 1, 8, 1>}, {pipeline_mode = #tpu.pipeline_mode<synchronous>, transform_indices = @transform_2, window_bounds = array<i64: 1, 8, 32>}, {pipeline_mode = #tpu.pipeline_mode<synchronous>, transform_indices = @transform_3, window_bounds = array<i64: 32, 96>}, {pipeline_mode = #tpu.pipeline_mode<synchronous>, transform_indices = @transform_4, window_bounds = array<i64: 32, 96>}, {pipeline_mode = #tpu.pipeline_mode<synchronous>, transform_indices = @transform_5, window_bounds = array<i64: 1, 96>}, {pipeline_mode = #tpu.pipeline_mode<synchronous>, transform_indices = @transform_6, window_bounds = array<i64: 1, 32>}, {transform_indices = @transform_7, window_bounds = array<i64: 1, 8, 32>}, {pipeline_mode = #tpu.pipeline_mode<synchronous>, transform_indices = @transform_8, window_bounds = array<i64: 1, 8, 32>}]} {
    %c0_i32 = arith.constant 0 : i32
    %0 = arith.cmpi eq, %arg0, %c0_i32 : i32
    %1 = arith.extui %0 : i1 to i32
    %c0_i32_0 = arith.constant 0 : i32
    %2 = arith.cmpi ne, %1, %c0_i32_0 : i32
    scf.if %2 {
      %c0_25 = arith.constant 0 : index
      %c0_26 = arith.constant 0 : index
      %c0_27 = arith.constant 0 : index
      %57 = vector.load %arg3[%c0_25, %c0_26, %c0_27] : memref<1x8x32xf32, #tpu.memory_space<vmem>>, vector<1x8x32xf32>
      %c0_28 = arith.constant 0 : index
      %c0_29 = arith.constant 0 : index
      %c0_30 = arith.constant 0 : index
      %58 = vector.load %arg9[%c0_28, %c0_29, %c0_30] : memref<1x8x32xf32, #tpu.memory_space<vmem>>, vector<1x8x32xf32>
      tpu.vector_store %arg9[%c0_28, %c0_29, %c0_30], %57 {strides = array<i32>} : memref<1x8x32xf32, #tpu.memory_space<vmem>>, vector<1x8x32xf32>,
    } else {
    }
    %c0_i32_1 = arith.constant 0 : i32
    %3 = arith.index_cast %c0_i32_1 : i32 to index
    %c0 = arith.constant 0 : index
    %c0_2 = arith.constant 0 : index
    %4 = vector.load %arg2[%3, %c0, %c0_2] : memref<1x8x1xf32, #tpu.memory_space<vmem>>, vector<1x8x1xf32>
    %5 = vector.shape_cast %4 : vector<1x8x1xf32> to vector<8x1xf32>
    %6 = arith.index_cast %c0_i32_1 : i32 to index
    %c0_3 = arith.constant 0 : index
    %c0_4 = arith.constant 0 : index
    %7 = vector.load %arg1[%6, %c0_3, %c0_4] : memref<1x8x32xbf16, #tpu.memory_space<vmem>>, vector<1x8x32xbf16>
    %8 = vector.shape_cast %7 : vector<1x8x32xbf16> to vector<8x32xbf16>
    %c0_5 = arith.constant 0 : index
    %c0_6 = arith.constant 0 : index
    %c0_7 = arith.constant 0 : index
    %9 = vector.load %arg9[%c0_5, %c0_6, %c0_7] : memref<1x8x32xf32, #tpu.memory_space<vmem>>, vector<1x8x32xf32>
    %10 = vector.shape_cast %9 : vector<1x8x32xf32> to vector<8x32xf32>
    %11 = vector.broadcast %5 : vector<8x1xf32> to vector<8x32xf32>
    %12 = arith.mulf %10, %11 : vector<8x32xf32>
    %c0_8 = arith.constant 0 : index
    %c0_9 = arith.constant 0 : index
    %13 = vector.load %arg4[%c0_8, %c0_9] : memref<32x96xbf16, #tpu.memory_space<vmem>>, vector<32x96xbf16>
    %cst = arith.constant dense<0.000000e+00> : vector<8x96xf32>
    %14 = tpu.matmul %8, %13, %cst {dimension_numbers = #tpu.dot_dimension_numbers<[1], [0], [0], [1], [0, 0, 1, 1], [], []>} : vector<8x32xbf16>, vector<32x96xbf16>, vector<8x96xf32> -> vector<8x96xf32>
    %c0_10 = arith.constant 0 : index
    %c0_11 = arith.constant 0 : index
    %15 = vector.load %arg6[%c0_10, %c0_11] : memref<1x96xf32, #tpu.memory_space<vmem>>, vector<1x96xf32>
    %16 = vector.broadcast %15 : vector<1x96xf32> to vector<8x96xf32>
    %17 = arith.addf %14, %16 : vector<8x96xf32>
    %18 = arith.truncf %12 : vector<8x32xf32> to vector<8x32xbf16>
    %c0_12 = arith.constant 0 : index
    %c0_13 = arith.constant 0 : index
    %19 = vector.load %arg5[%c0_12, %c0_13] : memref<32x96xbf16, #tpu.memory_space<vmem>>, vector<32x96xbf16>
    %cst_14 = arith.constant dense<0.000000e+00> : vector<8x96xf32>
    %20 = tpu.matmul %18, %19, %cst_14 {dimension_numbers = #tpu.dot_dimension_numbers<[1], [0], [0], [1], [0, 0, 1, 1], [], []>} : vector<8x32xbf16>, vector<32x96xbf16>, vector<8x96xf32> -> vector<8x96xf32>
    %21 = vector.extract_strided_slice %17 {offsets = [0, 0], sizes = [8, 32], strides = [1, 1]} : vector<8x96xf32> to vector<8x32xf32>
    %22 = vector.extract_strided_slice %20 {offsets = [0, 0], sizes = [8, 32], strides = [1, 1]} : vector<8x96xf32> to vector<8x32xf32>
    %23 = arith.addf %21, %22 : vector<8x32xf32>
    %24 = arith.negf %23 : vector<8x32xf32>
    %25 = math.exp %24 : vector<8x32xf32>
    %cst_15 = arith.constant 1.000000e+00 : f32
    %26 = vector.broadcast %cst_15 : f32 to vector<8x32xf32>
    %27 = arith.addf %26, %25 : vector<8x32xf32>
    %28 = arith.divf %26, %27 : vector<8x32xf32>
    %29 = vector.extract_strided_slice %17 {offsets = [0, 32], sizes = [8, 32], strides = [1, 1]} : vector<8x96xf32> to vector<8x32xf32>
    %30 = vector.extract_strided_slice %20 {offsets = [0, 32], sizes = [8, 32], strides = [1, 1]} : vector<8x96xf32> to vector<8x32xf32>
    %31 = arith.addf %29, %30 : vector<8x32xf32>
    %32 = arith.negf %31 : vector<8x32xf32>
    %33 = math.exp %32 : vector<8x32xf32>
    %cst_16 = arith.constant 1.000000e+00 : f32
    %34 = vector.broadcast %cst_16 : f32 to vector<8x32xf32>
    %35 = arith.addf %34, %33 : vector<8x32xf32>
    %36 = arith.divf %34, %35 : vector<8x32xf32>
    %37 = vector.extract_strided_slice %17 {offsets = [0, 64], sizes = [8, 32], strides = [1, 1]} : vector<8x96xf32> to vector<8x32xf32>
    %38 = vector.extract_strided_slice %20 {offsets = [0, 64], sizes = [8, 32], strides = [1, 1]} : vector<8x96xf32> to vector<8x32xf32>
    %c0_17 = arith.constant 0 : index
    %c0_18 = arith.constant 0 : index
    %39 = vector.load %arg7[%c0_17, %c0_18] : memref<1x32xf32, #tpu.memory_space<vmem>>, vector<1x32xf32>
    %40 = vector.broadcast %39 : vector<1x32xf32> to vector<8x32xf32>
    %41 = arith.addf %38, %40 : vector<8x32xf32>
    %42 = arith.mulf %28, %41 : vector<8x32xf32>
    %43 = arith.addf %37, %42 : vector<8x32xf32>
    %44 = math.tanh %43 : vector<8x32xf32>
    %cst_19 = arith.constant 1.000000e+00 : f32
    %45 = vector.broadcast %cst_19 : f32 to vector<8x32xf32>
    %46 = arith.subf %45, %36 : vector<8x32xf32>
    %47 = arith.mulf %46, %44 : vector<8x32xf32>
    %48 = arith.mulf %36, %12 : vector<8x32xf32>
    %49 = arith.addf %47, %48 : vector<8x32xf32>
    %c0_20 = arith.constant 0 : index
    %c0_21 = arith.constant 0 : index
    %c0_22 = arith.constant 0 : index
    %50 = vector.load %arg9[%c0_20, %c0_21, %c0_22] : memref<1x8x32xf32, #tpu.memory_space<vmem>>, vector<1x8x32xf32>
    %51 = vector.shape_cast %50 : vector<1x8x32xf32> to vector<8x32xf32>
    %52 = vector.shape_cast %49 : vector<8x32xf32> to vector<1x8x32xf32>
    tpu.vector_store %arg9[%c0_20, %c0_21, %c0_22], %52 {strides = array<i32>} : memref<1x8x32xf32, #tpu.memory_space<vmem>>, vector<1x8x32xf32>,
    %53 = arith.index_cast %c0_i32_1 : i32 to index
    %c0_23 = arith.constant 0 : index
    %c0_24 = arith.constant 0 : index
    %54 = vector.load %arg8[%53, %c0_23, %c0_24] : memref<1x8x32xf32, #tpu.memory_space<vmem>>, vector<1x8x32xf32>
    %55 = vector.shape_cast %54 : vector<1x8x32xf32> to vector<8x32xf32>
    %56 = vector.shape_cast %49 : vector<8x32xf32> to vector<1x8x32xf32>
    tpu.vector_store %arg8[%53, %c0_23, %c0_24], %56 {strides = array<i32>} : memref<1x8x32xf32, #tpu.memory_space<vmem>>, vector<1x8x32xf32>,
    %c1_i32 = arith.constant 1 : i32
    return
  }
  func.func @transform_0(%arg0: i32) -> (i32, i32, i32) {
    %c0_i32 = arith.constant 0 : i32
    %c0_i32_0 = arith.constant 0 : i32
    %c0_i32_1 = arith.constant 0 : i32
    return %arg0, %c0_i32, %c0_i32_0 : i32, i32, i32
  }
  func.func @transform_1(%arg0: i32) -> (i32, i32, i32) {
    %c0_i32 = arith.constant 0 : i32
    %c0_i32_0 = arith.constant 0 : i32
    %c0_i32_1 = arith.constant 0 : i32
    return %arg0, %c0_i32, %c0_i32_0 : i32, i32, i32
  }
  func.func @transform_2(%arg0: i32) -> (i32, i32, i32) {
    %c0_i32 = arith.constant 0 : i32
    %c0_i32_0 = arith.constant 0 : i32
    %c0_i32_1 = arith.constant 0 : i32
    %c0_i32_2 = arith.constant 0 : i32
    return %c0_i32, %c0_i32_0, %c0_i32_1 : i32, i32, i32
  }
  func.func @transform_3(%arg0: i32) -> (i32, i32) {
    %c0_i32 = arith.constant 0 : i32
    %c0_i32_0 = arith.constant 0 : i32
    %c0_i32_1 = arith.constant 0 : i32
    return %c0_i32, %c0_i32_0 : i32, i32
  }
  func.func @transform_4(%arg0: i32) -> (i32, i32) {
    %c0_i32 = arith.constant 0 : i32
    %c0_i32_0 = arith.constant 0 : i32
    %c0_i32_1 = arith.constant 0 : i32
    return %c0_i32, %c0_i32_0 : i32, i32
  }
  func.func @transform_5(%arg0: i32) -> (i32, i32) {
    %c0_i32 = arith.constant 0 : i32
    %c0_i32_0 = arith.constant 0 : i32
    %c0_i32_1 = arith.constant 0 : i32
    return %c0_i32, %c0_i32_0 : i32, i32
  }
  func.func @transform_6(%arg0: i32) -> (i32, i32) {
    %c0_i32 = arith.constant 0 : i32
    %c0_i32_0 = arith.constant 0 : i32
    %c0_i32_1 = arith.constant 0 : i32
    return %c0_i32, %c0_i32_0 : i32, i32
  }
  func.func @transform_7(%arg0: i32) -> (i32, i32, i32) {
    %c0_i32 = arith.constant 0 : i32
    %c0_i32_0 = arith.constant 0 : i32
    %c0_i32_1 = arith.constant 0 : i32
    return %arg0, %c0_i32, %c0_i32_0 : i32, i32, i32
  }
  func.func @transform_8(%arg0: i32) -> (i32, i32, i32) {
    %c0_i32 = arith.constant 0 : i32
    %c0_i32_0 = arith.constant 0 : i32
    %c0_i32_1 = arith.constant 0 : i32
    %c0_i32_2 = arith.constant 0 : i32
    return %c0_i32, %c0_i32_0, %c0_i32_1 : i32, i32, i32
  }
}

</mosaic_0001>

<llo_original>
// kernel: tpu_custom_call.1
$region0: #{tpu_custom_call.1}
  #allocation0 [shape = 'u32[]', space=smem, size = 0x4, offset = 0x4, fixed_abs, tag = 'smem constant byte address 0x4 - core index']
  #allocation1 [shape = 'u32[72,128]{1,0:T(1,128)}', space=vmem, size = 0x9000, scoped, tag = 'internal scratch']
  %s0 = inlined_call_operand.hbm [shape: bf16[1,8,32], index: 0, kind: input, shape index: {}]
  %s1 = inlined_call_operand.vmem [shape: f32[1,8,1], index: 1, kind: input, shape index: {}]
  %s2 = inlined_call_operand.vmem [shape: f32[1,8,32], index: 2, kind: input, shape index: {}]
  %s3 = inlined_call_operand.hbm [shape: bf16[32,96], index: 3, kind: input, shape index: {}]
  %s4 = inlined_call_operand.hbm [shape: bf16[32,96], index: 4, kind: input, shape index: {}]
  %s5 = inlined_call_operand.vmem [shape: f32[1,96], index: 5, kind: input, shape index: {}]
  %s6 = inlined_call_operand.vmem [shape: f32[1,32], index: 6, kind: input, shape index: {}]
  %s7 = inlined_call_operand.hbm [shape: f32[1,8,32], index: 7, kind: output, shape index: {0}]
  %s8 = inlined_call_operand.hbm [shape: f32[1,8,32], index: 8, kind: output, shape index: {1}]
  %9 = xla_tuple %s7, %s8
  %s10 = sld [smem:[#allocation0]]
  $region62: #{tpu_custom_call.1} parent=0
    _
  %s12 = ssub.s32 1, %s10
  %s13 = scalar_select 0, %s12, %s10
  $region1: #{tpu_custom_call.1} parent=0
    #allocation2 [shape = 'u8[2048]{0}', space=vmem, size = 0x800, scoped, tag = 'input window, operand 0, single buffered']
    #allocation3 [shape = 's32[1]{0}', space=sflag, size = 0x4, scoped, tag = 'scoped memory for tpu_custom_call.1']
    #allocation4 [shape = 's32[1]{0}', space=sflag, size = 0x4, scoped, tag = 'scoped memory for tpu_custom_call.1']
    #allocation5 [shape = 'u8[8192]{0}', space=vmem, size = 0x2000, scoped, tag = 'input window, operand 3, single buffered']
    #allocation6 [shape = 's32[1]{0}', space=sflag, size = 0x4, scoped, tag = 'scoped memory for tpu_custom_call.1']
    #allocation7 [shape = 'u8[8192]{0}', space=vmem, size = 0x2000, scoped, tag = 'input window, operand 4, single buffered']
    #allocation8 [shape = 'u8[4096]{0}', space=vmem, size = 0x1000, scoped, tag = 'output window, operand 0, single buffered']
    #allocation9 [shape = 'u8[4096]{0}', space=vmem, size = 0x1000, scoped, tag = 'output window, operand 1, single buffered']
    #allocation10 [shape = 's32[1]{0}', space=sflag, size = 0x4, scoped, tag = 'scoped memory for tpu_custom_call.1']
    %14 = vsyncpa [#allocation3], 0
    %15 = vsyncpa [#allocation6], 0
    %16 = vsyncpa [#allocation4], 0
    %17 = vsyncpa [#allocation10], 0
    // Predicated region
    $region2: #{tpu_custom_call.1} parent=1 // pred_check
      _
    $region3: #{tpu_custom_call.1} parent=1 // pred_check_branch
      %19 = sbr.rel (0) target = $region5
    $region4: #{tpu_custom_call.1} parent=1 // pred_region
      %21 = vsyncadd [#allocation3], 0
      %s23 = sshll.u32 %s0, 4
      %s24 = int_to_ptr.hbm [resolvable:$true] %s23
      %s25 = sshll.u32 [#allocation2], 4
      %s26 = int_to_ptr.vmem [resolvable:$true] %s25
      %28 = dma.hbm_to_vmem [thread:$0]  %s24, 64, %s26, [#allocation3]
    $region5: #{tpu_custom_call.1} parent=1 // pred_fallthru
      _
    // Predicated region
    $region6: #{tpu_custom_call.1} parent=1 // pred_check
      _
    $region7: #{tpu_custom_call.1} parent=1 // pred_check_branch
      %30 = sbr.rel (0) target = $region9
    $region8: #{tpu_custom_call.1} parent=1 // pred_region
      _
    $region9: #{tpu_custom_call.1} parent=1 // pred_fallthru
      _
    // Predicated region
    $region10: #{tpu_custom_call.1} parent=1 // pred_check
      _
    $region11: #{tpu_custom_call.1} parent=1 // pred_check_branch
      %32 = sbr.rel (0) target = $region13
    $region12: #{tpu_custom_call.1} parent=1 // pred_region
      _
    $region13: #{tpu_custom_call.1} parent=1 // pred_fallthru
      _
    // Predicated region
    $region14: #{tpu_custom_call.1} parent=1 // pred_check
      _
    $region15: #{tpu_custom_call.1} parent=1 // pred_check_branch
      %34 = sbr.rel (0) target = $region17
    $region16: #{tpu_custom_call.1} parent=1 // pred_region
      %36 = vsyncadd [#allocation6], 0
      %s37 = sshll.u32 %s3, 4
      %s38 = int_to_ptr.hbm [resolvable:$true] %s37
      %s39 = sshll.u32 [#allocation5], 4
      %s40 = int_to_ptr.vmem [resolvable:$true] %s39
      %45 = dma.hbm_to_vmem [thread:$0]  %s38, 256, %s40, [#allocation6], 64, 64, 4
    $region17: #{tpu_custom_call.1} parent=1 // pred_fallthru
      _
    // Predicated region
    $region18: #{tpu_custom_call.1} parent=1 // pred_check
      _
    $region19: #{tpu_custom_call.1} parent=1 // pred_check_branch
      %47 = sbr.rel (0) target = $region21
    $region20: #{tpu_custom_call.1} parent=1 // pred_region
      %49 = vsyncadd [#allocation6], 0
      %s50 = sshll.u32 %s4, 4
      %s51 = int_to_ptr.hbm [resolvable:$true] %s50
      %s52 = sshll.u32 [#allocation7], 4
      %s53 = int_to_ptr.vmem [resolvable:$true] %s52
      %58 = dma.hbm_to_vmem [thread:$0]  %s51, 256, %s53, [#allocation6], 64, 64, 4
    $region21: #{tpu_custom_call.1} parent=1 // pred_fallthru
      _
    // Predicated region
    $region22: #{tpu_custom_call.1} parent=1 // pred_check
      _
    $region23: #{tpu_custom_call.1} parent=1 // pred_check_branch
      %60 = sbr.rel (0) target = $region25
    $region24: #{tpu_custom_call.1} parent=1 // pred_region
      _
    $region25: #{tpu_custom_call.1} parent=1 // pred_fallthru
      _
    // Predicated region
    $region26: #{tpu_custom_call.1} parent=1 // pred_check
      _
    $region27: #{tpu_custom_call.1} parent=1 // pred_check_branch
      %62 = sbr.rel (0) target = $region29
    $region28: #{tpu_custom_call.1} parent=1 // pred_region
      _
    $region29: #{tpu_custom_call.1} parent=1 // pred_fallthru
      _
    // Predicated region
    $region30: #{tpu_custom_call.1} parent=1 // pred_check
      _
    $region31: #{tpu_custom_call.1} parent=1 // pred_check_branch
      %64 = sbr.rel (0) target = $region33
    $region32: #{tpu_custom_call.1} parent=1 // pred_region
      %66 = dma.done [#allocation3], 64
    $region33: #{tpu_custom_call.1} parent=1 // pred_fallthru
      _
    // Predicated region
    $region34: #{tpu_custom_call.1} parent=1 // pred_check
      _
    $region35: #{tpu_custom_call.1} parent=1 // pred_check_branch
      %68 = sbr.rel (0) target = $region37
    $region36: #{tpu_custom_call.1} parent=1 // pred_region
      %70 = dma.done [#allocation6], 256
    $region37: #{tpu_custom_call.1} parent=1 // pred_fallthru
      _
    // Predicated region
    $region38: #{tpu_custom_call.1} parent=1 // pred_check
      _
    $region39: #{tpu_custom_call.1} parent=1 // pred_check_branch
      %72 = sbr.rel (0) target = $region41
    $region40: #{tpu_custom_call.1} parent=1 // pred_region
      %74 = dma.done [#allocation6], 256
    $region41: #{tpu_custom_call.1} parent=1 // pred_fallthru
      _
    %p76 = scmp.eq.s32.totalorder 0, 0
    // Predicated region
    $region42: #{tpu_custom_call.1} parent=1 // pred_check
      %p77 = pneg %p76
    $region43: #{tpu_custom_call.1} parent=1 // pred_check_branch
      %79 = sbr.rel (%p77) target = $region45
    $region44: #{tpu_custom_call.1} parent=1 // pred_region
      %v80 = vld [vmem:[%s2] sm:$0xff]
      %vm81 = vcmask 261120
      %82 = vst.msk [vmem:[#allocation9] sm:$0xff] %vm81, %v80
    $region45: #{tpu_custom_call.1} parent=1 // pred_fallthru
      _
    %v83 = vld [vmem:[%s1] sm:$0xff]
    %v84 = vld [vmem:[#allocation2] sm:$0xf]
    %v85 = vld [vmem:[#allocation9] sm:$0xff]
    %87 = vset.pattern.permute.xlu0 0
    %88 = vperm.xlu0 %87, %v83
    %v89 = vpop.permute.xlu0 %88
    %v91 = vmul.f32 %v85, %v89
    %v92 = vld [vmem:[#allocation5] sm:$0xf]
    %v93 = vld [vmem:[#allocation5 + $0x4] sm:$0xf]
    %v94 = vld [vmem:[#allocation5 + $0x8] sm:$0xf]
    %v95 = vld [vmem:[#allocation5 + $0xc] sm:$0xf]
    %v96 = vld [vmem:[%s5] sm:$0x1]
    %v98 = vperm.slane %v96, 0
    %v104 = vunpack.c.l.b16 %v92
    %v105 = vunpack.c.l.b16 %v93
    %v106 = vunpack.c.l.b16 %v94
    %v107 = vunpack.c.l.b16 %v95
    %v108 = vpack.c.b16 %v105, %v104
    %v109 = vpack.c.b16 %v107, %v106
    %vm112 = vcmask 261120
    %v114 = vsel %vm112, %v84, 0
    %116 = vmatpush.bf16.msra.mxu0 0
    %117 = vmatpush.bf16.msra.mxu0 0
    %118 = vmatpush.bf16.msra.mxu0 0
    %119 = vmatpush.bf16.msra.mxu0 0
    %120 = vmatpush.bf16.msra.mxu0 0
    %121 = vmatpush.bf16.msra.mxu0 0
    %122 = vmatpush.bf16.msra.mxu0 %v109
    %123 = vmatpush.bf16.msra.mxu0 %v108
    %124 = vmatmul.bf16.gmra.mxu0 %v114
    %v125 = vpop.f32.mrf.mxu0
    %v126 = vadd.f32 %v98, %v125
    %v127 = vpop.f32.mrf.mxu0
    %128 = vdwg.mxu0
    %v129 = vpack.c.bf16 %v91, %v91
    %v130 = vld [vmem:[#allocation7] sm:$0xf]
    %v131 = vld [vmem:[#allocation7 + $0x4] sm:$0xf]
    %v132 = vld [vmem:[#allocation7 + $0x8] sm:$0xf]
    %v133 = vld [vmem:[#allocation7 + $0xc] sm:$0xf]
    %v138 = vunpack.c.l.b16 %v130
    %v139 = vunpack.c.l.b16 %v131
    %v140 = vunpack.c.l.b16 %v132
    %v141 = vunpack.c.l.b16 %v133
    %v142 = vpack.c.b16 %v139, %v138
    %v143 = vpack.c.b16 %v141, %v140
    %v147 = vsel %vm112, %v129, 0
    %149 = vmatpush.bf16.msra.mxu0 0
    %150 = vmatpush.bf16.msra.mxu0 0
    %151 = vmatpush.bf16.msra.mxu0 0
    %152 = vmatpush.bf16.msra.mxu0 0
    %153 = vmatpush.bf16.msra.mxu0 0
    %154 = vmatpush.bf16.msra.mxu0 0
    %155 = vmatpush.bf16.msra.mxu0 %v143
    %156 = vmatpush.bf16.msra.mxu0 %v142
    %157 = vmatmul.bf16.gmra.mxu0 %v147
    %v158 = vpop.f32.mrf.mxu0
    %v159 = vadd.f32 0.0, %v158
    %v160 = vpop.f32.mrf.mxu0
    %161 = vdwg.mxu0
    %v162 = vadd.f32 %v126, %v159
    %v163 = vxor.u32 %v162, 2147483648
    %v164 = vmul.f32 %v163, 1.442695
    %v165 = vpow.pop %v164
    %v166 = vadd.f32 %v165, 1.0
    %v167 = vrcp.pop %v166
    %v168 = vmul.f32 %v166, %v167
    %v169 = vsub.f32 1.0, %v168
    %v170 = vmul.f32 %v167, %v169
    %v171 = vadd.f32 %v167, %v170
    %vm172 = vweird.f32 %v166
    %vm173 = vweird.f32 %v167
    %vm174 = vmor %vm172, %vm173
    %v175 = vsel %vm174, %v167, %v171
    %v176 = vand.u32 2147483647, %v166
    %vm177 = vcmp.eq.f32.partialorder %v176, 8.507059e+37
    %v178 = vand.u32 %v166, 2147483648
    %v179 = vor.u32 1.1754944e-38, %v178
    %v180 = vsel %vm177, %v179, %v175
    %v181 = vmul.f32 1.0, %v180
    %v182 = vld [vmem:[%s6] sm:$0x1]
    %v184 = vperm.slane %v182, 0
    %185 = vrot.lane.b32.xlu0 %v184, 64
    %v186 = vpop.permute.xlu0 %185
    %v188 = vadd.f32 %v159, %v186
    %190 = vrot.lane.b32.xlu0 %v188, 64
    %v191 = vpop.permute.xlu0 %190
    %v193 = vmul.f32 %v181, %v191
    %195 = vrot.lane.b32.xlu0 %v193, 64
    %v196 = vpop.permute.xlu0 %195
    %v198 = vadd.f32 %v126, %v196
    %v199 = vtanh.pop %v198
    %v200 = vsub.f32 1.0, %v181
    %202 = vrot.lane.b32.xlu0 %v199, 96
    %v203 = vpop.permute.xlu0 %202
    %v205 = vmul.f32 %v200, %v203
    %207 = vrot.lane.b32.xlu0 %v91, 32
    %v208 = vpop.permute.xlu0 %207
    %v210 = vmul.f32 %v181, %v208
    %v211 = vadd.f32 %v205, %v210
    %213 = vrot.lane.b32.xlu0 %v211, 96
    %v214 = vpop.permute.xlu0 %213
    %216 = vst.msk [vmem:[#allocation9] sm:$0xff] %vm112, %v214
    %217 = vst.msk [vmem:[#allocation8] sm:$0xff] %vm112, %v214
    // Predicated region
    $region46: #{tpu_custom_call.1} parent=1 // pred_check
      _
    $region47: #{tpu_custom_call.1} parent=1 // pred_check_branch
      %219 = sbr.rel (0) target = $region49
    $region48: #{tpu_custom_call.1} parent=1 // pred_region
      %221 = vsyncadd [#allocation4], 0
      %s223 = sshll.u32 [#allocation8], 4
      %s224 = int_to_ptr.vmem [resolvable:$true] %s223
      %s225 = sshll.u32 %s7, 4
      %s226 = int_to_ptr.hbm [resolvable:$true] %s225
      %228 = dma.vmem_to_hbm [thread:$0]  %s224, 128, %s226, [#allocation4]
    $region49: #{tpu_custom_call.1} parent=1 // pred_fallthru
      _
    // Predicated region
    $region50: #{tpu_custom_call.1} parent=1 // pred_check
      _
    $region51: #{tpu_custom_call.1} parent=1 // pred_check_branch
      %230 = sbr.rel (0) target = $region53
    $region52: #{tpu_custom_call.1} parent=1 // pred_region
      %232 = vsyncadd [#allocation10], 0
      %s234 = sshll.u32 [#allocation9], 4
      %s235 = int_to_ptr.vmem [resolvable:$true] %s234
      %s236 = sshll.u32 %s8, 4
      %s237 = int_to_ptr.hbm [resolvable:$true] %s236
      %239 = dma.vmem_to_hbm [thread:$0]  %s235, 128, %s237, [#allocation10]
    $region53: #{tpu_custom_call.1} parent=1 // pred_fallthru
      _
    // Predicated region
    $region54: #{tpu_custom_call.1} parent=1 // pred_check
      _
    $region55: #{tpu_custom_call.1} parent=1 // pred_check_branch
      %241 = sbr.rel (0) target = $region57
    $region56: #{tpu_custom_call.1} parent=1 // pred_region
      %243 = dma.done [#allocation4], 128
    $region57: #{tpu_custom_call.1} parent=1 // pred_fallthru
      _
    // Predicated region
    $region58: #{tpu_custom_call.1} parent=1 // pred_check
      _
    $region59: #{tpu_custom_call.1} parent=1 // pred_check_branch
      %245 = sbr.rel (0) target = $region61
    $region60: #{tpu_custom_call.1} parent=1 // pred_region
      %247 = dma.done [#allocation10], 128
    $region61: #{tpu_custom_call.1} parent=1 // pred_fallthru
      _
    %248 = vsyncpa [#allocation3], 1
    %249 = vsyncpa [#allocation6], 1
    %250 = vsyncpa [#allocation4], 1
    %251 = vsyncpa [#allocation10], 1

</llo_original>
